<compile_context>
chip_gen: v7x
topology: tpu7x:2x2x1
jax: 0.10.0
libtpu: 0.0.40
codegen_flags: <defaults>
</compile_context>

<pallas_src>
import jax
import jax.numpy as jnp
from jax.experimental import pallas as pl
from jax.experimental.pallas import tpu as pltpu


# ---------------------------------------------------------------------------
# helpers
# ---------------------------------------------------------------------------
def _round_up(n, m):
    return ((n + m - 1) // m) * m


def _pad_to(x, shape):
    pads = [(0, s - d) for d, s in zip(x.shape, shape)]
    return jnp.pad(x, pads)


def _gru_gates(gx, h, ug, uh):
    """Gate math given pre-computed input projection gx=(B,3Hp) f32 and h=(B,Hp) f32."""
    hp = h.shape[-1]
    cdt = ug.dtype  # matmul compute dtype (f32 or bf16); accumulation is f32.
    gh = jnp.dot(h.astype(cdt), ug, preferred_element_type=jnp.float32)
    z = jax.nn.sigmoid(gx[:, :hp] + gh[:, :hp])
    r = jax.nn.sigmoid(gx[:, hp:2 * hp] + gh[:, hp:2 * hp])
    h_tilde = jnp.tanh(
        gx[:, 2 * hp:]
        + jnp.dot((r * h).astype(cdt), uh, preferred_element_type=jnp.float32))
    return (1.0 - z) * h + z * h_tilde


# ---------------------------------------------------------------------------
# kernels
# ---------------------------------------------------------------------------
def gru_cell_kernel(x_ref, h_ref, wg_ref, ug_ref, uh_ref, bg_ref, out_ref):
    """Single-step GRU cell (matches VanillaGRUCell.forward)."""
    cdt = wg_ref.dtype
    gx = jnp.dot(x_ref[...].astype(cdt), wg_ref[...],
                 preferred_element_type=jnp.float32) + bg_ref[...]
    h = h_ref[...].astype(jnp.float32)
    out_ref[...] = _gru_gates(gx, h, ug_ref[...], uh_ref[...]).astype(out_ref.dtype)


def gru_input_proj_kernel(x_ref, wg_ref, bg_ref, gx_ref):
    """gx = x @ Wg + bg for a tile of rows (all timesteps flattened into M)."""
    gx_ref[...] = (jnp.dot(x_ref[...], wg_ref[...],
                           preferred_element_type=jnp.float32) + bg_ref[...])


def gru_recur_kernel(gx_ref, h0_ref, ug_ref, uh_ref, out_ref, h_scr):
    """Recurrent part: per-timestep hidden-state matmuls with carried h."""
    t = pl.program_id(0)

    @pl.when(t == 0)
    def _():
        h_scr[...] = h0_ref[...].astype(jnp.float32)

    h_new = _gru_gates(gx_ref[0], h_scr[...], ug_ref[...], uh_ref[...])
    h_scr[...] = h_new
    out_ref[0] = h_new.astype(out_ref.dtype)


# ---------------------------------------------------------------------------
# parameter packing (done once, outside the per-step path)
# ---------------------------------------------------------------------------
def pack_params(params, input_size, hidden_size, param_dtype=jnp.float32,
                lane=128):
    """Fuse + transpose + pad PyTorch-layout (out,in) weights into MXU-friendly blocks."""
    ip = _round_up(input_size, lane)
    hp = _round_up(hidden_size, lane)

    def wpad(name, rows):
        w, _ = params[name]                              # (H, fan_in)
        return _pad_to(w.T.astype(param_dtype), (rows, hp))

    def bpad(name):
        _, b = params[name]
        return _pad_to(b.astype(jnp.float32), (hp,))

    wg = jnp.concatenate([wpad("W_z", ip), wpad("W_r", ip), wpad("W_h", ip)],
                         axis=1)                         # (Ip, 3Hp)
    ug = jnp.concatenate([wpad("U_z", hp), wpad("U_r", hp)], axis=1)  # (Hp, 2Hp)
    uh = wpad("U_h", hp)                                 # (Hp, Hp)
    bg = jnp.concatenate([bpad("W_z") + bpad("U_z"),
                          bpad("W_r") + bpad("U_r"),
                          bpad("W_h") + bpad("U_h")]).reshape(1, 3 * hp)
    return dict(wg=wg, ug=ug, uh=uh, bg=bg, Ip=ip, Hp=hp,
                input_size=input_size, hidden_size=hidden_size,
                param_dtype=param_dtype)


def _weight_bytes(packed, keys=("wg", "ug", "uh", "bg")):
    return sum(int(packed[k].size) * packed[k].dtype.itemsize for k in keys)


def _vmem_limit(working_set_bytes):
    # Never below the default scoped limit, never above v7x physical VMEM.
    return int(min(max(2 * working_set_bytes + (4 << 20), 32 << 20), 64 << 20))


# ---------------------------------------------------------------------------
# wrappers
# ---------------------------------------------------------------------------
def vanilla_gru_cell(x_t, h_prev, packed):
    """Single timestep: x_t (B, I), h_prev (B, H) -> h_t (B, H)."""
    B = x_t.shape[0]
    H = packed["hidden_size"]
    ip, hp = packed["Ip"], packed["Hp"]
    bp = _round_up(max(B, 8), 8)

    x_p = _pad_to(x_t.astype(packed["param_dtype"]), (bp, ip))
    h_p = _pad_to(h_prev.astype(jnp.float32), (bp, hp))

    wbytes = _weight_bytes(packed)
    act_bytes = 4 * bp * (ip + 2 * hp)
    flops = 2 * bp * (ip * 3 * hp + 3 * hp * hp)

    vmem = pl.BlockSpec(memory_space=pltpu.MemorySpace.VMEM)
    out = pl.pallas_call(
        gru_cell_kernel,
        out_shape=jax.ShapeDtypeStruct((bp, hp), jnp.float32),
        in_specs=[vmem] * 6,
        out_specs=vmem,
        compiler_params=pltpu.CompilerParams(
            vmem_limit_bytes=_vmem_limit(wbytes + act_bytes)),
        cost_estimate=pl.CostEstimate(flops=flops,
                                      transcendentals=3 * bp * hp,
                                      bytes_accessed=wbytes + act_bytes),
    )(x_p, h_p, packed["wg"], packed["ug"], packed["uh"], packed["bg"])
    return out[:B, :H].astype(x_t.dtype)


def _pick_row_tile(T, bp, cap_rows=512):
    """Largest t_chunk dividing T with t_chunk*bp <= cap_rows (>=1)."""
    max_chunk = max(1, min(T, cap_rows // max(bp, 1)))
    for c in range(max_chunk, 0, -1):
        if T % c == 0:
            return c * bp
    return bp


def vanilla_gru_sequence(x_seq, h0, packed):
    """Run the cell over a sequence: x_seq (T, B, I), h0 (B, H) -> (T, B, H)."""
    T, B, _ = x_seq.shape
    H = packed["hidden_size"]
    ip, hp = packed["Ip"], packed["Hp"]
    bp = _round_up(max(B, 8), 8)

    x_p = _pad_to(x_seq.astype(packed["param_dtype"]), (T, bp, ip))
    h_p = _pad_to(h0.astype(jnp.float32), (bp, hp))

    # ---- stage 1: input projection for all timesteps as one big matmul ----
    rows = T * bp
    tm = _pick_row_tile(T, bp)
    x_flat = x_p.reshape(rows, ip)

    proj_wbytes = _weight_bytes(packed, keys=("wg", "bg"))
    proj_act = x_flat.dtype.itemsize * tm * ip + 4 * tm * 3 * hp
    gx_all = pl.pallas_call(
        gru_input_proj_kernel,
        out_shape=jax.ShapeDtypeStruct((rows, 3 * hp), jnp.float32),
        grid=(rows // tm,),
        in_specs=[
            pl.BlockSpec((tm, ip), lambda m: (m, 0)),        # x rows: streamed
            pl.BlockSpec((ip, 3 * hp), lambda m: (0, 0)),    # Wg: resident
            pl.BlockSpec((1, 3 * hp), lambda m: (0, 0)),     # bg: resident
        ],
        out_specs=pl.BlockSpec((tm, 3 * hp), lambda m: (m, 0)),
        compiler_params=pltpu.CompilerParams(
            dimension_semantics=("parallel",),
            vmem_limit_bytes=_vmem_limit(proj_wbytes + 2 * proj_act)),
        cost_estimate=pl.CostEstimate(
            flops=2 * rows * ip * 3 * hp, transcendentals=0,
            bytes_accessed=proj_wbytes + rows * (x_flat.dtype.itemsize * ip
                                                 + 4 * 3 * hp)),
    )(x_flat, packed["wg"], packed["bg"])
    gx_all = gx_all.reshape(T, bp, 3 * hp)

    # ---- stage 2: serial recurrence, U matrices VMEM-resident --------------
    rec_wbytes = _weight_bytes(packed, keys=("ug", "uh"))
    step_act_bytes = 4 * bp * (3 * hp + hp)
    out = pl.pallas_call(
        gru_recur_kernel,
        out_shape=jax.ShapeDtypeStruct((T, bp, hp), jnp.float32),
        grid=(T,),
        in_specs=[
            pl.BlockSpec((1, bp, 3 * hp), lambda t: (t, 0, 0)),  # gx_t: streamed
            pl.BlockSpec((bp, hp), lambda t: (0, 0)),            # h0: resident
            pl.BlockSpec((hp, 2 * hp), lambda t: (0, 0)),        # Ug: resident
            pl.BlockSpec((hp, hp), lambda t: (0, 0)),            # Uh: resident
        ],
        out_specs=pl.BlockSpec((1, bp, hp), lambda t: (t, 0, 0)),
        scratch_shapes=[pltpu.VMEM((bp, hp), jnp.float32)],      # carried h
        compiler_params=pltpu.CompilerParams(
            dimension_semantics=("arbitrary",),                  # recurrent axis
            vmem_limit_bytes=_vmem_limit(rec_wbytes + 4 * step_act_bytes)),
        cost_estimate=pl.CostEstimate(
            flops=2 * T * bp * 3 * hp * hp,
            transcendentals=3 * T * bp * hp,
            bytes_accessed=rec_wbytes + T * step_act_bytes),
    )(gx_all, h_p, packed["ug"], packed["uh"])
    return out[:, :B, :H].astype(x_seq.dtype)


# ---------------------------------------------------------------------------
# reference + init
# ---------------------------------------------------------------------------
def init_params(key, input_size, hidden_size, dtype=jnp.float32):
    """Deterministic PyTorch-like init: U(-1/sqrt(fan_in), 1/sqrt(fan_in))."""
    params = {}
    specs = {
        "W_z": input_size, "U_z": hidden_size,
        "W_r": input_size, "U_r": hidden_size,
        "W_h": input_size, "U_h": hidden_size,
    }
    for name, fan_in in specs.items():
        key, kw, kb = jax.random.split(key, 3)
        bound = 1.0 / float(fan_in) ** 0.5
        w = jax.random.uniform(kw, (hidden_size, fan_in), dtype, -bound, bound)
        b = jax.random.uniform(kb, (hidden_size,), dtype, -bound, bound)
        params[name] = (w, b)
    return params


def reference_gru(x_t, h_prev, params):
    def lin(name, v):
        w, b = params[name]
        return v @ w.T + b
    z = jax.nn.sigmoid(lin("W_z", x_t) + lin("U_z", h_prev))
    r = jax.nn.sigmoid(lin("W_r", x_t) + lin("U_r", h_prev))
    h_tilde = jnp.tanh(lin("W_h", x_t) + lin("U_h", r * h_prev))
    return (1.0 - z) * h_prev + z * h_tilde


# ---------------------------------------------------------------------------
# main
# ---------------------------------------------------------------------------
if __name__ == "__main__":
    batch, input_size, hidden_size, seq_len = 2, 16, 32, 8

    key = jax.random.PRNGKey(0)
    key, kx, kh, ks = jax.random.split(key, 4)
    x_t = jax.random.normal(kx, (batch, input_size), jnp.float32)
    h_prev = jax.random.normal(kh, (batch, hidden_size), jnp.float32)
    x_seq = jax.random.normal(ks, (seq_len, batch, input_size), jnp.float32)

    params = init_params(key, input_size, hidden_size)
    # f32 params here for tight tolerances; use param_dtype=jnp.bfloat16 on
    # v6e/v7x for half the weight traffic (accumulation stays f32).
    packed = pack_params(params, input_size, hidden_size,
                         param_dtype=jnp.float32)

    # --- single timestep (matches VanillaGRUCell.forward exactly) ----------
    h_t = jax.block_until_ready(vanilla_gru_cell(x_t, h_prev, packed))
    h_ref = reference_gru(x_t, h_prev, params)
    assert h_t.shape == (batch, hidden_size)
    assert jnp.allclose(h_t, h_ref, atol=1e-4, rtol=1e-4), "cell mismatch"

    # --- sequence mode: fused input projection + resident recurrence --------
    h_all = jax.block_until_ready(vanilla_gru_sequence(x_seq, h_prev, packed))
    h = h_prev
    ref_steps = []
    for t in range(seq_len):
        h = reference_gru(x_seq[t], h, params)
        ref_steps.append(h)
    h_all_ref = jnp.stack(ref_steps)
    assert h_all.shape == (seq_len, batch, hidden_size)
    assert jnp.allclose(h_all, h_all_ref, atol=1e-4, rtol=1e-4), "seq mismatch"

    print("KERNEL_OK")
</pallas_src>

<mosaic_0001>
module attributes {stable_mosaic.version = 11 : i64} {
  func.func @gru_cell_kernel(%arg0: memref<8x128xf32, #tpu.memory_space<vmem>>, %arg1: memref<8x128xf32, #tpu.memory_space<vmem>>, %arg2: memref<128x384xf32, #tpu.memory_space<vmem>>, %arg3: memref<128x256xf32, #tpu.memory_space<vmem>>, %arg4: memref<128x128xf32, #tpu.memory_space<vmem>>, %arg5: memref<1x384xf32, #tpu.memory_space<vmem>>, %arg6: memref<8x128xf32, #tpu.memory_space<vmem>>) attributes {dimension_semantics = [], scalar_prefetch = 0 : i64, scratch_operands = 0 : i64, tpu.core_type = #tpu.core_type<tc>} {
    %c0 = arith.constant 0 : index
    %c0_0 = arith.constant 0 : index
    %0 = vector.load %arg0[%c0, %c0_0] : memref<8x128xf32, #tpu.memory_space<vmem>>, vector<8x128xf32>
    %c0_1 = arith.constant 0 : index
    %c0_2 = arith.constant 0 : index
    %1 = vector.load %arg2[%c0_1, %c0_2] : memref<128x384xf32, #tpu.memory_space<vmem>>, vector<128x384xf32>
    %cst = arith.constant dense<0.000000e+00> : vector<8x384xf32>
    %2 = tpu.matmul %0, %1, %cst {dimension_numbers = #tpu.dot_dimension_numbers<[1], [0], [0], [1], [0, 0, 1, 1], [], []>} : vector<8x128xf32>, vector<128x384xf32>, vector<8x384xf32> -> vector<8x384xf32>
    %c0_3 = arith.constant 0 : index
    %c0_4 = arith.constant 0 : index
    %3 = vector.load %arg5[%c0_3, %c0_4] : memref<1x384xf32, #tpu.memory_space<vmem>>, vector<1x384xf32>
    %4 = vector.broadcast %3 : vector<1x384xf32> to vector<8x384xf32>
    %5 = arith.addf %2, %4 : vector<8x384xf32>
    %c0_5 = arith.constant 0 : index
    %c0_6 = arith.constant 0 : index
    %6 = vector.load %arg1[%c0_5, %c0_6] : memref<8x128xf32, #tpu.memory_space<vmem>>, vector<8x128xf32>
    %c0_7 = arith.constant 0 : index
    %c0_8 = arith.constant 0 : index
    %7 = vector.load %arg3[%c0_7, %c0_8] : memref<128x256xf32, #tpu.memory_space<vmem>>, vector<128x256xf32>
    %c0_9 = arith.constant 0 : index
    %c0_10 = arith.constant 0 : index
    %8 = vector.load %arg4[%c0_9, %c0_10] : memref<128x128xf32, #tpu.memory_space<vmem>>, vector<128x128xf32>
    %cst_11 = arith.constant dense<0.000000e+00> : vector<8x256xf32>
    %9 = tpu.matmul %6, %7, %cst_11 {dimension_numbers = #tpu.dot_dimension_numbers<[1], [0], [0], [1], [0, 0, 1, 1], [], []>} : vector<8x128xf32>, vector<128x256xf32>, vector<8x256xf32> -> vector<8x256xf32>
    %10 = vector.extract_strided_slice %5 {offsets = [0, 0], sizes = [8, 128], strides = [1, 1]} : vector<8x384xf32> to vector<8x128xf32>
    %11 = vector.extract_strided_slice %9 {offsets = [0, 0], sizes = [8, 128], strides = [1, 1]} : vector<8x256xf32> to vector<8x128xf32>
    %12 = arith.addf %10, %11 : vector<8x128xf32>
    %13 = arith.negf %12 : vector<8x128xf32>
    %14 = math.exp %13 : vector<8x128xf32>
    %cst_12 = arith.constant 1.000000e+00 : f32
    %15 = vector.broadcast %cst_12 : f32 to vector<8x128xf32>
    %16 = arith.addf %15, %14 : vector<8x128xf32>
    %17 = arith.divf %15, %16 : vector<8x128xf32>
    %18 = vector.extract_strided_slice %5 {offsets = [0, 128], sizes = [8, 128], strides = [1, 1]} : vector<8x384xf32> to vector<8x128xf32>
    %19 = vector.extract_strided_slice %9 {offsets = [0, 128], sizes = [8, 128], strides = [1, 1]} : vector<8x256xf32> to vector<8x128xf32>
    %20 = arith.addf %18, %19 : vector<8x128xf32>
    %21 = arith.negf %20 : vector<8x128xf32>
    %22 = math.exp %21 : vector<8x128xf32>
    %cst_13 = arith.constant 1.000000e+00 : f32
    %23 = vector.broadcast %cst_13 : f32 to vector<8x128xf32>
    %24 = arith.addf %23, %22 : vector<8x128xf32>
    %25 = arith.divf %23, %24 : vector<8x128xf32>
    %26 = vector.extract_strided_slice %5 {offsets = [0, 256], sizes = [8, 128], strides = [1, 1]} : vector<8x384xf32> to vector<8x128xf32>
    %27 = arith.mulf %25, %6 : vector<8x128xf32>
    %cst_14 = arith.constant dense<0.000000e+00> : vector<8x128xf32>
    %28 = tpu.matmul %27, %8, %cst_14 {dimension_numbers = #tpu.dot_dimension_numbers<[1], [0], [0], [1], [0, 0, 1, 1], [], []>} : vector<8x128xf32>, vector<128x128xf32>, vector<8x128xf32> -> vector<8x128xf32>
    %29 = arith.addf %26, %28 : vector<8x128xf32>
    %30 = math.tanh %29 : vector<8x128xf32>
    %cst_15 = arith.constant 1.000000e+00 : f32
    %31 = vector.broadcast %cst_15 : f32 to vector<8x128xf32>
    %32 = arith.subf %31, %17 : vector<8x128xf32>
    %33 = arith.mulf %32, %6 : vector<8x128xf32>
    %34 = arith.mulf %17, %30 : vector<8x128xf32>
    %35 = arith.addf %33, %34 : vector<8x128xf32>
    %c0_16 = arith.constant 0 : index
    %c0_17 = arith.constant 0 : index
    %36 = vector.load %arg6[%c0_16, %c0_17] : memref<8x128xf32, #tpu.memory_space<vmem>>, vector<8x128xf32>
    tpu.vector_store %arg6[%c0_16, %c0_17], %35 {strides = array<i32>} : memref<8x128xf32, #tpu.memory_space<vmem>>, vector<8x128xf32>,
    return
  }
}

</mosaic_0001>

<llo_original>
// kernel: tpu_custom_call.1
$region0: #{tpu_custom_call.1}
  #allocation0 [shape = 'u32[]', space=smem, size = 0x4, offset = 0x4, fixed_abs, tag = 'smem constant byte address 0x4 - core index']
  #allocation1 [shape = 'u32[144,128]{1,0:T(1,128)}', space=vmem, size = 0x12000, scoped, tag = 'internal scratch']
  %s0 = inlined_call_operand.hbm [shape: f32[8,128], index: 0, kind: input, shape index: {}]
  %s1 = inlined_call_operand.hbm [shape: f32[8,128], index: 1, kind: input, shape index: {}]
  %s2 = inlined_call_operand.hbm [shape: f32[128,384], index: 2, kind: input, shape index: {}]
  %s3 = inlined_call_operand.hbm [shape: f32[128,256], index: 3, kind: input, shape index: {}]
  %s4 = inlined_call_operand.hbm [shape: f32[128,128], index: 4, kind: input, shape index: {}]
  %s5 = inlined_call_operand.vmem [shape: f32[1,384], index: 5, kind: input, shape index: {}]
  %s6 = inlined_call_operand.hbm [shape: f32[8,128], index: 6, kind: output, shape index: {}]
  %s7 = sld [smem:[#allocation0]]
  $region54: #{tpu_custom_call.1} parent=0
    _
  %s9 = ssub.s32 1, %s7
  %s10 = scalar_select 0, %s9, %s7
  $region1: #{tpu_custom_call.1} parent=0
    #allocation2 [shape = 'u8[4096]{0}', space=vmem, size = 0x1000, scoped, tag = 'input window, operand 0, single buffered']
    #allocation3 [shape = 's32[1]{0}', space=sflag, size = 0x4, scoped, tag = 'scoped memory for tpu_custom_call.1']
    #allocation4 [shape = 's32[1]{0}', space=sflag, size = 0x4, scoped, tag = 'scoped memory for tpu_custom_call.1']
    #allocation5 [shape = 'u8[4096]{0}', space=vmem, size = 0x1000, scoped, tag = 'input window, operand 1, single buffered']
    #allocation6 [shape = 's32[1]{0}', space=sflag, size = 0x4, scoped, tag = 'scoped memory for tpu_custom_call.1']
    #allocation7 [shape = 'u8[196608]{0}', space=vmem, size = 0x30000, scoped, tag = 'input window, operand 2, single buffered']
    #allocation8 [shape = 'u8[131072]{0}', space=vmem, size = 0x20000, scoped, tag = 'input window, operand 3, single buffered']
    #allocation9 [shape = 's32[1]{0}', space=sflag, size = 0x4, scoped, tag = 'scoped memory for tpu_custom_call.1']
    #allocation10 [shape = 'u8[65536]{0}', space=vmem, size = 0x10000, scoped, tag = 'input window, operand 4, single buffered']
    #allocation11 [shape = 'u8[4096]{0}', space=vmem, size = 0x1000, scoped, tag = 'output window, operand 0, single buffered']
    %11 = vsyncpa [#allocation3], 0
    %12 = vsyncpa [#allocation6], 0
    %13 = vsyncpa [#allocation9], 0
    %14 = vsyncpa [#allocation4], 0
    // Predicated region
    $region2: #{tpu_custom_call.1} parent=1 // pred_check
      _
    $region3: #{tpu_custom_call.1} parent=1 // pred_check_branch
      %16 = sbr.rel (0) target = $region5
    $region4: #{tpu_custom_call.1} parent=1 // pred_region
      %s18 = ssub.s32 128, 128
      %19 = vsyncadd [#allocation3], %s18
      %s21 = sshll.u32 [#allocation2], 4
      %s22 = int_to_ptr.vmem [resolvable:$true] %s21
      %24 = dma.hbm_to_vmem [thread:$0]  %s0, 128, %s22, [#allocation3]
    $region5: #{tpu_custom_call.1} parent=1 // pred_fallthru
      _
    // Predicated region
    $region6: #{tpu_custom_call.1} parent=1 // pred_check
      _
    $region7: #{tpu_custom_call.1} parent=1 // pred_check_branch
      %26 = sbr.rel (0) target = $region9
    $region8: #{tpu_custom_call.1} parent=1 // pred_region
      %s28 = ssub.s32 128, 128
      %29 = vsyncadd [#allocation6], %s28
      %s31 = sshll.u32 [#allocation5], 4
      %s32 = int_to_ptr.vmem [resolvable:$true] %s31
      %34 = dma.hbm_to_vmem [thread:$0]  %s1, 128, %s32, [#allocation6]
    $region9: #{tpu_custom_call.1} parent=1 // pred_fallthru
      _
    // Predicated region
    $region10: #{tpu_custom_call.1} parent=1 // pred_check
      _
    $region11: #{tpu_custom_call.1} parent=1 // pred_check_branch
      %36 = sbr.rel (0) target = $region13
    $region12: #{tpu_custom_call.1} parent=1 // pred_region
      %s38 = ssub.s32 6144, 6144
      %39 = vsyncadd [#allocation6], %s38
      %s40 = sshll.u32 [#allocation7], 4
      %s41 = int_to_ptr.vmem [resolvable:$true] %s40
      %46 = dma.hbm_to_vmem [thread:$0]  %s2, 6144, %s41, [#allocation6], 384, 384, 24
    $region13: #{tpu_custom_call.1} parent=1 // pred_fallthru
      _
    // Predicated region
    $region14: #{tpu_custom_call.1} parent=1 // pred_check
      _
    $region15: #{tpu_custom_call.1} parent=1 // pred_check_branch
      %48 = sbr.rel (0) target = $region17
    $region16: #{tpu_custom_call.1} parent=1 // pred_region
      %s50 = ssub.s32 4096, 4096
      %51 = vsyncadd [#allocation9], %s50
      %s52 = sshll.u32 [#allocation8], 4
      %s53 = int_to_ptr.vmem [resolvable:$true] %s52
      %58 = dma.hbm_to_vmem [thread:$0]  %s3, 4096, %s53, [#allocation9], 256, 256, 16
    $region17: #{tpu_custom_call.1} parent=1 // pred_fallthru
      _
    // Predicated region
    $region18: #{tpu_custom_call.1} parent=1 // pred_check
      _
    $region19: #{tpu_custom_call.1} parent=1 // pred_check_branch
      %60 = sbr.rel (0) target = $region21
    $region20: #{tpu_custom_call.1} parent=1 // pred_region
      %s62 = ssub.s32 2048, 2048
      %63 = vsyncadd [#allocation9], %s62
      %s64 = sshll.u32 [#allocation10], 4
      %s65 = int_to_ptr.vmem [resolvable:$true] %s64
      %70 = dma.hbm_to_vmem [thread:$0]  %s4, 2048, %s65, [#allocation9], 128, 128, 8
    $region21: #{tpu_custom_call.1} parent=1 // pred_fallthru
      _
    // Predicated region
    $region22: #{tpu_custom_call.1} parent=1 // pred_check
      _
    $region23: #{tpu_custom_call.1} parent=1 // pred_check_branch
      %72 = sbr.rel (0) target = $region25
    $region24: #{tpu_custom_call.1} parent=1 // pred_region
      _
    $region25: #{tpu_custom_call.1} parent=1 // pred_fallthru
      _
    // Predicated region
    $region26: #{tpu_custom_call.1} parent=1 // pred_check
      _
    $region27: #{tpu_custom_call.1} parent=1 // pred_check_branch
      %74 = sbr.rel (0) target = $region29
    $region28: #{tpu_custom_call.1} parent=1 // pred_region
      %75 = dma.done [#allocation3], 128
    $region29: #{tpu_custom_call.1} parent=1 // pred_fallthru
      _
    // Predicated region
    $region30: #{tpu_custom_call.1} parent=1 // pred_check
      _
    $region31: #{tpu_custom_call.1} parent=1 // pred_check_branch
      %77 = sbr.rel (0) target = $region33
    $region32: #{tpu_custom_call.1} parent=1 // pred_region
      %78 = dma.done [#allocation6], 128
    $region33: #{tpu_custom_call.1} parent=1 // pred_fallthru
      _
    // Predicated region
    $region34: #{tpu_custom_call.1} parent=1 // pred_check
      _
    $region35: #{tpu_custom_call.1} parent=1 // pred_check_branch
      %80 = sbr.rel (0) target = $region37
    $region36: #{tpu_custom_call.1} parent=1 // pred_region
      %81 = dma.done [#allocation6], 6144
    $region37: #{tpu_custom_call.1} parent=1 // pred_fallthru
      _
    // Predicated region
    $region38: #{tpu_custom_call.1} parent=1 // pred_check
      _
    $region39: #{tpu_custom_call.1} parent=1 // pred_check_branch
      %83 = sbr.rel (0) target = $region41
    $region40: #{tpu_custom_call.1} parent=1 // pred_region
      %84 = dma.done [#allocation9], 4096
    $region41: #{tpu_custom_call.1} parent=1 // pred_fallthru
      _
    // Predicated region
    $region42: #{tpu_custom_call.1} parent=1 // pred_check
      _
    $region43: #{tpu_custom_call.1} parent=1 // pred_check_branch
      %86 = sbr.rel (0) target = $region45
    $region44: #{tpu_custom_call.1} parent=1 // pred_region
      %87 = dma.done [#allocation9], 2048
    $region45: #{tpu_custom_call.1} parent=1 // pred_fallthru
      _
    %v88 = vld [vmem:[#allocation2] sm:$0xff]
    %v89 = vld [vmem:[#allocation7] sm:$0xff]
    %v90 = vld [vmem:[#allocation7 + $0x8] sm:$0xff]
    %v91 = vld [vmem:[#allocation7 + $0x10] sm:$0xff]
    %v92 = vld [vmem:[#allocation7 + $0x18] sm:$0xff]
    %v93 = vld [vmem:[#allocation7 + $0x20] sm:$0xff]
    %v94 = vld [vmem:[#allocation7 + $0x28] sm:$0xff]
    %v95 = vld [vmem:[#allocation7 + $0x30] sm:$0xff]
    %v96 = vld [vmem:[#allocation7 + $0x38] sm:$0xff]
    %v97 = vld [vmem:[#allocation7 + $0x40] sm:$0xff]
    %v98 = vld [vmem:[#allocation7 + $0x48] sm:$0xff]
    %v99 = vld [vmem:[#allocation7 + $0x50] sm:$0xff]
    %v100 = vld [vmem:[#allocation7 + $0x58] sm:$0xff]
    %v101 = vld [vmem:[#allocation7 + $0x60] sm:$0xff]
    %v102 = vld [vmem:[#allocation7 + $0x68] sm:$0xff]
    %v103 = vld [vmem:[#allocation7 + $0x70] sm:$0xff]
    %v104 = vld [vmem:[#allocation7 + $0x78] sm:$0xff]
    %v105 = vld [vmem:[#allocation7 + $0x80] sm:$0xff]
    %v106 = vld [vmem:[#allocation7 + $0x88] sm:$0xff]
    %v107 = vld [vmem:[#allocation7 + $0x90] sm:$0xff]
    %v108 = vld [vmem:[#allocation7 + $0x98] sm:$0xff]
    %v109 = vld [vmem:[#allocation7 + $0xa0] sm:$0xff]
    %v110 = vld [vmem:[#allocation7 + $0xa8] sm:$0xff]
    %v111 = vld [vmem:[#allocation7 + $0xb0] sm:$0xff]
    %v112 = vld [vmem:[#allocation7 + $0xb8] sm:$0xff]
    %v113 = vld [vmem:[#allocation7 + $0xc0] sm:$0xff]
    %v114 = vld [vmem:[#allocation7 + $0xc8] sm:$0xff]
    %v115 = vld [vmem:[#allocation7 + $0xd0] sm:$0xff]
    %v116 = vld [vmem:[#allocation7 + $0xd8] sm:$0xff]
    %v117 = vld [vmem:[#allocation7 + $0xe0] sm:$0xff]
    %v118 = vld [vmem:[#allocation7 + $0xe8] sm:$0xff]
    %v119 = vld [vmem:[#allocation7 + $0xf0] sm:$0xff]
    %v120 = vld [vmem:[#allocation7 + $0xf8] sm:$0xff]
    %v121 = vld [vmem:[#allocation7 + $0x100] sm:$0xff]
    %v122 = vld [vmem:[#allocation7 + $0x108] sm:$0xff]
    %v123 = vld [vmem:[#allocation7 + $0x110] sm:$0xff]
    %v124 = vld [vmem:[#allocation7 + $0x118] sm:$0xff]
    %v125 = vld [vmem:[#allocation7 + $0x120] sm:$0xff]
    %v126 = vld [vmem:[#allocation7 + $0x128] sm:$0xff]
    %v127 = vld [vmem:[#allocation7 + $0x130] sm:$0xff]
    %v128 = vld [vmem:[#allocation7 + $0x138] sm:$0xff]
    %v129 = vld [vmem:[#allocation7 + $0x140] sm:$0xff]
    %v130 = vld [vmem:[#allocation7 + $0x148] sm:$0xff]
    %v131 = vld [vmem:[#allocation7 + $0x150] sm:$0xff]
    %v132 = vld [vmem:[#allocation7 + $0x158] sm:$0xff]
    %v133 = vld [vmem:[#allocation7 + $0x160] sm:$0xff]
    %v134 = vld [vmem:[#allocation7 + $0x168] sm:$0xff]
    %v135 = vld [vmem:[#allocation7 + $0x170] sm:$0xff]
    %v136 = vld [vmem:[#allocation7 + $0x178] sm:$0xff]
    %v137 = vld [vmem:[%s5] sm:$0x7]
    %v139 = vlaneseq
    %v140 = vshrl.u32 %v139, 7
    %v141 = vsub.s32 0, %v140
    %v142 = vrot.slane %v137, %v141
    %v143 = vlaneseq
    %v144 = vshrl.u32 %v143, 7
    %v145 = vsub.s32 1, %v144
    %v146 = vrot.slane %v137, %v145
    %v147 = vlaneseq
    %v148 = vshrl.u32 %v147, 7
    %v149 = vsub.s32 2, %v148
    %v150 = vrot.slane %v137, %v149
    %154 = vmatprep.subr.mxu0 %v90
    %155 = vmatpush1.msra.mxu0 %v89
    %156 = vmatprep.subr.mxu0 %v93
    %157 = vmatpush1.msra.mxu0 %v92
    %158 = vmatprep.subr.mxu0 %v96
    %159 = vmatpush1.msra.mxu0 %v95
    %160 = vmatprep.subr.mxu0 %v99
    %161 = vmatpush1.msra.mxu0 %v98
    %162 = vmatprep.subr.mxu0 %v102
    %163 = vmatpush1.msra.mxu0 %v101
    %164 = vmatprep.subr.mxu0 %v105
    %165 = vmatpush1.msra.mxu0 %v104
    %166 = vmatprep.subr.mxu0 %v108
    %167 = vmatpush1.msra.mxu0 %v107
    %168 = vmatprep.subr.mxu0 %v111
    %169 = vmatpush1.msra.mxu0 %v110
    %170 = vmatprep.subr.mxu0 %v114
    %171 = vmatpush1.msra.mxu0 %v113
    %172 = vmatprep.subr.mxu0 %v117
    %173 = vmatpush1.msra.mxu0 %v116
    %174 = vmatprep.subr.mxu0 %v120
    %175 = vmatpush1.msra.mxu0 %v119
    %176 = vmatprep.subr.mxu0 %v123
    %177 = vmatpush1.msra.mxu0 %v122
    %178 = vmatprep.subr.mxu0 %v126
    %179 = vmatpush1.msra.mxu0 %v125
    %180 = vmatprep.subr.mxu0 %v129
    %181 = vmatpush1.msra.mxu0 %v128
    %182 = vmatprep.subr.mxu0 %v132
    %183 = vmatpush1.msra.mxu0 %v131
    %184 = vmatprep.subr.mxu0 %v135
    %185 = vmatpush1.msra.mxu0 %v134
    %186 = vmatprep.subr.mxu0 0.0
    %187 = vmatpush1.msra.mxu0 0.0
    %188 = vmatprep.subr.mxu0 0.0
    %189 = vmatpush1.msra.mxu0 0.0
    %190 = vmatprep.subr.mxu0 0.0
    %191 = vmatpush1.msra.mxu0 0.0
    %192 = vmatprep.subr.mxu0 0.0
    %193 = vmatpush1.msra.mxu0 0.0
    %194 = vmatprep.subr.mxu0 0.0
    %195 = vmatpush1.msra.mxu0 0.0
    %196 = vmatprep.subr.mxu0 0.0
    %197 = vmatpush1.msra.mxu0 0.0
    %198 = vmatprep.subr.mxu0 0.0
    %199 = vmatpush1.msra.mxu0 0.0
    %200 = vmatprep.subr.mxu0 0.0
    %201 = vmatpush1.msra.mxu0 0.0
    %202 = vmatprep.subr.mxu0 0.0
    %203 = vmatpush1.msra.mxu0 0.0
    %204 = vmatprep.subr.mxu0 0.0
    %205 = vmatpush1.msra.mxu0 0.0
    %206 = vmatprep.subr.mxu0 0.0
    %207 = vmatpush1.msra.mxu0 0.0
    %208 = vmatprep.subr.mxu0 0.0
    %209 = vmatpush1.msra.mxu0 0.0
    %210 = vmatprep.subr.mxu0 0.0
    %211 = vmatpush1.msra.mxu0 0.0
    %212 = vmatprep.subr.mxu0 0.0
    %213 = vmatpush1.msra.mxu0 0.0
    %214 = vmatprep.subr.mxu0 0.0
    %215 = vmatpush1.msra.mxu0 0.0
    %216 = vmatprep.subr.mxu0 0.0
    %217 = vmatpush1.msra.mxu0 0.0
    %218 = vmatprep.mubr.f32.mxu0 0.0
    %219 = vmatmul.mubr.f32.gmra.mrb[0].mxu0 %v88
    %v220 = vpop.f32.mrb[0].mxu0
    %v221 = vadd.f32 %v142, %v220
    %v222 = vpop.f32.mrb[0].mxu0
    %v223 = vadd.f32 %v146, %v222
    %224 = vdwg.mxu0
    %225 = vmatprep.subr.mxu0 0.0
    %226 = vmatpush1.msra.mxu0 %v91
    %227 = vmatprep.subr.mxu0 0.0
    %228 = vmatpush1.msra.mxu0 %v94
    %229 = vmatprep.subr.mxu0 0.0
    %230 = vmatpush1.msra.mxu0 %v97
    %231 = vmatprep.subr.mxu0 0.0
    %232 = vmatpush1.msra.mxu0 %v100
    %233 = vmatprep.subr.mxu0 0.0
    %234 = vmatpush1.msra.mxu0 %v103
    %235 = vmatprep.subr.mxu0 0.0
    %236 = vmatpush1.msra.mxu0 %v106
    %237 = vmatprep.subr.mxu0 0.0
    %238 = vmatpush1.msra.mxu0 %v109
    %239 = vmatprep.subr.mxu0 0.0
    %240 = vmatpush1.msra.mxu0 %v112
    %241 = vmatprep.subr.mxu0 0.0
    %242 = vmatpush1.msra.mxu0 %v115
    %243 = vmatprep.subr.mxu0 0.0
    %244 = vmatpush1.msra.mxu0 %v118
    %245 = vmatprep.subr.mxu0 0.0
    %246 = vmatpush1.msra.mxu0 %v121
    %247 = vmatprep.subr.mxu0 0.0
    %248 = vmatpush1.msra.mxu0 %v124
    %249 = vmatprep.subr.mxu0 0.0
    %250 = vmatpush1.msra.mxu0 %v127
    %251 = vmatprep.subr.mxu0 0.0
    %252 = vmatpush1.msra.mxu0 %v130
    %253 = vmatprep.subr.mxu0 0.0
    %254 = vmatpush1.msra.mxu0 %v133
    %255 = vmatprep.subr.mxu0 0.0
    %256 = vmatpush1.msra.mxu0 %v136
    %257 = vmatprep.subr.mxu0 0.0
    %258 = vmatpush1.msra.mxu0 0.0
    %259 = vmatprep.subr.mxu0 0.0
    %260 = vmatpush1.msra.mxu0 0.0
    %261 = vmatprep.subr.mxu0 0.0
    %262 = vmatpush1.msra.mxu0 0.0
    %263 = vmatprep.subr.mxu0 0.0
    %264 = vmatpush1.msra.mxu0 0.0
    %265 = vmatprep.subr.mxu0 0.0
    %266 = vmatpush1.msra.mxu0 0.0
    %267 = vmatprep.subr.mxu0 0.0
    %268 = vmatpush1.msra.mxu0 0.0
    %269 = vmatprep.subr.mxu0 0.0
    %270 = vmatpush1.msra.mxu0 0.0
    %271 = vmatprep.subr.mxu0 0.0
    %272 = vmatpush1.msra.mxu0 0.0
    %273 = vmatprep.subr.mxu0 0.0
    %274 = vmatpush1.msra.mxu0 0.0
    %275 = vmatprep.subr.mxu0 0.0
    %276 = vmatpush1.msra.mxu0 0.0
    %277 = vmatprep.subr.mxu0 0.0
    %278 = vmatpush1.msra.mxu0 0.0
    %279 = vmatprep.subr.mxu0 0.0
    %280 = vmatpush1.msra.mxu0 0.0
    %281 = vmatprep.subr.mxu0 0.0
    %282 = vmatpush1.msra.mxu0 0.0
    %283 = vmatprep.subr.mxu0 0.0
    %284 = vmatpush1.msra.mxu0 0.0
    %285 = vmatprep.subr.mxu0 0.0
    %286 = vmatpush1.msra.mxu0 0.0
    %287 = vmatprep.subr.mxu0 0.0
    %288 = vmatpush1.msra.mxu0 0.0
    %289 = vmatprep.mubr.f32.mxu0 0.0
    %290 = vmatmul.mubr.f32.gmra.mrb[0].mxu0 %v88
    %v291 = vpop.f32.mrb[0].mxu0
    %v292 = vadd.f32 %v150, %v291
    %v293 = vpop.f32.mrb[0].mxu0
    %294 = vdwg.mxu0
    %v295 = vld [vmem:[#allocation5] sm:$0xff]
    %v296 = vld [vmem:[#allocation8] sm:$0xff]
    %v297 = vld [vmem:[#allocation8 + $0x8] sm:$0xff]
    %v298 = vld [vmem:[#allocation8 + $0x10] sm:$0xff]
    %v299 = vld [vmem:[#allocation8 + $0x18] sm:$0xff]
    %v300 = vld [vmem:[#allocation8 + $0x20] sm:$0xff]
    %v301 = vld [vmem:[#allocation8 + $0x28] sm:$0xff]
    %v302 = vld [vmem:[#allocation8 + $0x30] sm:$0xff]
    %v303 = vld [vmem:[#allocation8 + $0x38] sm:$0xff]
    %v304 = vld [vmem:[#allocation8 + $0x40] sm:$0xff]
    %v305 = vld [vmem:[#allocation8 + $0x48] sm:$0xff]
    %v306 = vld [vmem:[#allocation8 + $0x50] sm:$0xff]
    %v307 = vld [vmem:[#allocation8 + $0x58] sm:$0xff]
    %v308 = vld [vmem:[#allocation8 + $0x60] sm:$0xff]
    %v309 = vld [vmem:[#allocation8 + $0x68] sm:$0xff]
    %v310 = vld [vmem:[#allocation8 + $0x70] sm:$0xff]
    %v311 = vld [vmem:[#allocation8 + $0x78] sm:$0xff]
    %v312 = vld [vmem:[#allocation8 + $0x80] sm:$0xff]
    %v313 = vld [vmem:[#allocation8 + $0x88] sm:$0xff]
    %v314 = vld [vmem:[#allocation8 + $0x90] sm:$0xff]
    %v315 = vld [vmem:[#allocation8 + $0x98] sm:$0xff]
    %v316 = vld [vmem:[#allocation8 + $0xa0] sm:$0xff]
    %v317 = vld [vmem:[#allocation8 + $0xa8] sm:$0xff]
    %v318 = vld [vmem:[#allocation8 + $0xb0] sm:$0xff]
    %v319 = vld [vmem:[#allocation8 + $0xb8] sm:$0xff]
    %v320 = vld [vmem:[#allocation8 + $0xc0] sm:$0xff]
    %v321 = vld [vmem:[#allocation8 + $0xc8] sm:$0xff]
    %v322 = vld [vmem:[#allocation8 + $0xd0] sm:$0xff]
    %v323 = vld [vmem:[#allocation8 + $0xd8] sm:$0xff]
    %v324 = vld [vmem:[#allocation8 + $0xe0] sm:$0xff]
    %v325 = vld [vmem:[#allocation8 + $0xe8] sm:$0xff]
    %v326 = vld [vmem:[#allocation8 + $0xf0] sm:$0xff]
    %v327 = vld [vmem:[#allocation8 + $0xf8] sm:$0xff]
    %v328 = vld [vmem:[#allocation10] sm:$0xff]
    %v329 = vld [vmem:[#allocation10 + $0x8] sm:$0xff]
    %v330 = vld [vmem:[#allocation10 + $0x10] sm:$0xff]
    %v331 = vld [vmem:[#allocation10 + $0x18] sm:$0xff]
    %v332 = vld [vmem:[#allocation10 + $0x20] sm:$0xff]
    %v333 = vld [vmem:[#allocation10 + $0x28] sm:$0xff]
    %v334 = vld [vmem:[#allocation10 + $0x30] sm:$0xff]
    %v335 = vld [vmem:[#allocation10 + $0x38] sm:$0xff]
    %v336 = vld [vmem:[#allocation10 + $0x40] sm:$0xff]
    %v337 = vld [vmem:[#allocation10 + $0x48] sm:$0xff]
    %v338 = vld [vmem:[#allocation10 + $0x50] sm:$0xff]
    %v339 = vld [vmem:[#allocation10 + $0x58] sm:$0xff]
    %v340 = vld [vmem:[#allocation10 + $0x60] sm:$0xff]
    %v341 = vld [vmem:[#allocation10 + $0x68] sm:$0xff]
    %v342 = vld [vmem:[#allocation10 + $0x70] sm:$0xff]
    %v343 = vld [vmem:[#allocation10 + $0x78] sm:$0xff]
    %344 = vmatprep.subr.mxu0 %v297
    %345 = vmatpush1.msra.mxu0 %v296
    %346 = vmatprep.subr.mxu0 %v299
    %347 = vmatpush1.msra.mxu0 %v298
    %348 = vmatprep.subr.mxu0 %v301
    %349 = vmatpush1.msra.mxu0 %v300
    %350 = vmatprep.subr.mxu0 %v303
    %351 = vmatpush1.msra.mxu0 %v302
    %352 = vmatprep.subr.mxu0 %v305
    %353 = vmatpush1.msra.mxu0 %v304
    %354 = vmatprep.subr.mxu0 %v307
    %355 = vmatpush1.msra.mxu0 %v306
    %356 = vmatprep.subr.mxu0 %v309
    %357 = vmatpush1.msra.mxu0 %v308
    %358 = vmatprep.subr.mxu0 %v311
    %359 = vmatpush1.msra.mxu0 %v310
    %360 = vmatprep.subr.mxu0 %v313
    %361 = vmatpush1.msra.mxu0 %v312
    %362 = vmatprep.subr.mxu0 %v315
    %363 = vmatpush1.msra.mxu0 %v314
    %364 = vmatprep.subr.mxu0 %v317
    %365 = vmatpush1.msra.mxu0 %v316
    %366 = vmatprep.subr.mxu0 %v319
    %367 = vmatpush1.msra.mxu0 %v318
    %368 = vmatprep.subr.mxu0 %v321
    %369 = vmatpush1.msra.mxu0 %v320
    %370 = vmatprep.subr.mxu0 %v323
    %371 = vmatpush1.msra.mxu0 %v322
    %372 = vmatprep.subr.mxu0 %v325
    %373 = vmatpush1.msra.mxu0 %v324
    %374 = vmatprep.subr.mxu0 %v327
    %375 = vmatpush1.msra.mxu0 %v326
    %376 = vmatprep.subr.mxu0 0.0
    %377 = vmatpush1.msra.mxu0 0.0
    %378 = vmatprep.subr.mxu0 0.0
    %379 = vmatpush1.msra.mxu0 0.0
    %380 = vmatprep.subr.mxu0 0.0
    %381 = vmatpush1.msra.mxu0 0.0
    %382 = vmatprep.subr.mxu0 0.0
    %383 = vmatpush1.msra.mxu0 0.0
    %384 = vmatprep.subr.mxu0 0.0
    %385 = vmatpush1.msra.mxu0 0.0
    %386 = vmatprep.subr.mxu0 0.0
    %387 = vmatpush1.msra.mxu0 0.0
    %388 = vmatprep.subr.mxu0 0.0
    %389 = vmatpush1.msra.mxu0 0.0
    %390 = vmatprep.subr.mxu0 0.0
    %391 = vmatpush1.msra.mxu0 0.0
    %392 = vmatprep.subr.mxu0 0.0
    %393 = vmatpush1.msra.mxu0 0.0
    %394 = vmatprep.subr.mxu0 0.0
    %395 = vmatpush1.msra.mxu0 0.0
    %396 = vmatprep.subr.mxu0 0.0
    %397 = vmatpush1.msra.mxu0 0.0
    %398 = vmatprep.subr.mxu0 0.0
    %399 = vmatpush1.msra.mxu0 0.0
    %400 = vmatprep.subr.mxu0 0.0
    %401 = vmatpush1.msra.mxu0 0.0
    %402 = vmatprep.subr.mxu0 0.0
    %403 = vmatpush1.msra.mxu0 0.0
    %404 = vmatprep.subr.mxu0 0.0
    %405 = vmatpush1.msra.mxu0 0.0
    %406 = vmatprep.subr.mxu0 0.0
    %407 = vmatpush1.msra.mxu0 0.0
    %408 = vmatprep.mubr.f32.mxu0 0.0
    %409 = vmatmul.mubr.f32.gmra.mrb[0].mxu0 %v295
    %v410 = vpop.f32.mrb[0].mxu0
    %v411 = vadd.f32 0.0, %v410
    %v412 = vpop.f32.mrb[0].mxu0
    %v413 = vadd.f32 0.0, %v412
    %414 = vdwg.mxu0
    %v415 = vadd.f32 %v221, %v411
    %v416 = vxor.u32 %v415, 2147483648
    %v417 = vmul.f32 %v416, 1.442695
    %v418 = vpow.pop %v417
    %v419 = vadd.f32 %v418, 1.0
    %v420 = vrcp.pop %v419
    %v421 = vmul.f32 1.0, %v420
    %v422 = vadd.f32 %v223, %v413
    %v423 = vxor.u32 %v422, 2147483648
    %v424 = vmul.f32 %v423, 1.442695
    %v425 = vpow.pop %v424
    %v426 = vadd.f32 %v425, 1.0
    %v427 = vrcp.pop %v426
    %v428 = vmul.f32 1.0, %v427
    %v429 = vmul.f32 %v428, %v295
    %430 = vmatprep.subr.mxu0 0.0
    %431 = vmatpush1.msra.mxu0 %v328
    %432 = vmatprep.subr.mxu0 0.0
    %433 = vmatpush1.msra.mxu0 %v329
    %434 = vmatprep.subr.mxu0 0.0
    %435 = vmatpush1.msra.mxu0 %v330
    %436 = vmatprep.subr.mxu0 0.0
    %437 = vmatpush1.msra.mxu0 %v331
    %438 = vmatprep.subr.mxu0 0.0
    %439 = vmatpush1.msra.mxu0 %v332
    %440 = vmatprep.subr.mxu0 0.0
    %441 = vmatpush1.msra.mxu0 %v333
    %442 = vmatprep.subr.mxu0 0.0
    %443 = vmatpush1.msra.mxu0 %v334
    %444 = vmatprep.subr.mxu0 0.0
    %445 = vmatpush1.msra.mxu0 %v335
    %446 = vmatprep.subr.mxu0 0.0
    %447 = vmatpush1.msra.mxu0 %v336
    %448 = vmatprep.subr.mxu0 0.0
    %449 = vmatpush1.msra.mxu0 %v337
    %450 = vmatprep.subr.mxu0 0.0
    %451 = vmatpush1.msra.mxu0 %v338
    %452 = vmatprep.subr.mxu0 0.0
    %453 = vmatpush1.msra.mxu0 %v339
    %454 = vmatprep.subr.mxu0 0.0
    %455 = vmatpush1.msra.mxu0 %v340
    %456 = vmatprep.subr.mxu0 0.0
    %457 = vmatpush1.msra.mxu0 %v341
    %458 = vmatprep.subr.mxu0 0.0
    %459 = vmatpush1.msra.mxu0 %v342
    %460 = vmatprep.subr.mxu0 0.0
    %461 = vmatpush1.msra.mxu0 %v343
    %462 = vmatprep.subr.mxu0 0.0
    %463 = vmatpush1.msra.mxu0 0.0
    %464 = vmatprep.subr.mxu0 0.0
    %465 = vmatpush1.msra.mxu0 0.0
    %466 = vmatprep.subr.mxu0 0.0
    %467 = vmatpush1.msra.mxu0 0.0
    %468 = vmatprep.subr.mxu0 0.0
    %469 = vmatpush1.msra.mxu0 0.0
    %470 = vmatprep.subr.mxu0 0.0
    %471 = vmatpush1.msra.mxu0 0.0
    %472 = vmatprep.subr.mxu0 0.0
    %473 = vmatpush1.msra.mxu0 0.0
    %474 = vmatprep.subr.mxu0 0.0
    %475 = vmatpush1.msra.mxu0 0.0
    %476 = vmatprep.subr.mxu0 0.0
    %477 = vmatpush1.msra.mxu0 0.0
    %478 = vmatprep.subr.mxu0 0.0
    %479 = vmatpush1.msra.mxu0 0.0
    %480 = vmatprep.subr.mxu0 0.0
    %481 = vmatpush1.msra.mxu0 0.0
    %482 = vmatprep.subr.mxu0 0.0
    %483 = vmatpush1.msra.mxu0 0.0
    %484 = vmatprep.subr.mxu0 0.0
    %485 = vmatpush1.msra.mxu0 0.0
    %486 = vmatprep.subr.mxu0 0.0
    %487 = vmatpush1.msra.mxu0 0.0
    %488 = vmatprep.subr.mxu0 0.0
    %489 = vmatpush1.msra.mxu0 0.0
    %490 = vmatprep.subr.mxu0 0.0
    %491 = vmatpush1.msra.mxu0 0.0
    %492 = vmatprep.subr.mxu0 0.0
    %493 = vmatpush1.msra.mxu0 0.0
    %494 = vmatprep.mubr.f32.mxu0 0.0
    %495 = vmatmul.mubr.f32.gmra.mrb[0].mxu0 %v429
    %v496 = vpop.f32.mrb[0].mxu0
    %v497 = vadd.f32 0.0, %v496
    %v498 = vpop.f32.mrb[0].mxu0
    %499 = vdwg.mxu0
    %v500 = vadd.f32 %v292, %v497
    %v501 = vtanh.pop %v500
    %v502 = vsub.f32 1.0, %v421
    %v503 = vmul.f32 %v502, %v295
    %v504 = vmul.f32 %v421, %v501
    %v505 = vadd.f32 %v503, %v504
    %506 = vst [vmem:[#allocation11] sm:$0xff] %v505
    // Predicated region
    $region46: #{tpu_custom_call.1} parent=1 // pred_check
      _
    $region47: #{tpu_custom_call.1} parent=1 // pred_check_branch
      %508 = sbr.rel (0) target = $region49
    $region48: #{tpu_custom_call.1} parent=1 // pred_region
      %s510 = ssub.s32 128, 128
      %511 = vsyncadd [#allocation4], %s510
      %s513 = sshll.u32 [#allocation11], 4
      %s514 = int_to_ptr.vmem [resolvable:$true] %s513
      %516 = dma.vmem_to_hbm [thread:$0]  %s514, 128, %s6, [#allocation4]
    $region49: #{tpu_custom_call.1} parent=1 // pred_fallthru
      _
    // Predicated region
    $region50: #{tpu_custom_call.1} parent=1 // pred_check
      _
    $region51: #{tpu_custom_call.1} parent=1 // pred_check_branch
      %518 = sbr.rel (0) target = $region53
    $region52: #{tpu_custom_call.1} parent=1 // pred_region
      %519 = dma.done [#allocation4], 128
    $region53: #{tpu_custom_call.1} parent=1 // pred_fallthru
      _
    %520 = vsyncpa [#allocation3], 1
    %521 = vsyncpa [#allocation6], 1
    %522 = vsyncpa [#allocation9], 1
    %523 = vsyncpa [#allocation4], 1

</llo_original>
